<compile_context>
chip_gen: v5e
topology: v5e:2x2
jax: 0.10.0
libtpu: 0.0.40
codegen_flags: <defaults>
</compile_context>

<pallas_src>
import functools

import numpy as np
import jax
import jax.numpy as jnp
from jax.experimental import pallas as pl
from jax.experimental.pallas import tpu as pltpu

LANE = 128


def _simple_layer_kernel(x_ref, x1_ref, y1_ref, x2_ref, y2_ref, xs_ref,
                         *, w1_taps, w2_taps):
    # x_ref : (TB, H,  L)  packed, lane-dense input slab (L % 128 == 0)
    # x1/y1 : (TB, H1, L)  conv1 pre-activation / sigmoid   (H1 = H - 2)
    # x2/y2 : (TB, H2, L)  conv2 pre-activation / sigmoid   (H2 = H - 3)
    # xs_ref: (TB, H,  L)  VMEM scratch holding the current lane-shifted slab.
    # Lanes beyond each image's valid window are don't-care junk the wrapper
    # slices off; writing full L-wide rows keeps every store unmasked.
    TB, _, L = x_ref.shape
    H1 = x1_ref.shape[1]
    H2 = x2_ref.shape[1]

    def group_by_dj(taps):
        groups = {}
        for di, dj, w in taps:
            groups.setdefault(dj, []).append((di, w))
        return sorted(groups.items())

    # ---------------- conv 3x3 ----------------
    acc1 = None
    for dj, rows in group_by_dj(w1_taps):
        if dj == 0:
            src = x_ref
        else:
            # hoisted lane shift: one shifted copy per dj, reused by all row taps
            # (tail dj lanes of the scratch stay stale -> junk columns only)
            xs_ref[:, :, :L - dj] = x_ref[:, :, dj:]
            src = xs_ref
        for di, w in rows:
            t = w * src[:, di:di + H1, :]
            acc1 = t if acc1 is None else acc1 + t
    if acc1 is None:
        acc1 = jnp.zeros((TB, H1, L), jnp.float32)
    y1 = jax.nn.sigmoid(acc1)
    x1_ref[...] = acc1
    y1_ref[...] = y1

    # ---------------- conv 2x2 (on y1) ----------------
    acc2 = None
    for dj, rows in group_by_dj(w2_taps):
        if dj == 0:
            def get(di):
                return y1[:, di:di + H2, :]
        else:
            xs_ref[:, :H1, :L - dj] = y1[:, :, dj:]   # hoisted lane shift of y1

            def get(di):
                return xs_ref[:, di:di + H2, :]
        for di, w in rows:
            t = w * get(di)
            acc2 = t if acc2 is None else acc2 + t
    if acc2 is None:
        acc2 = jnp.zeros((TB, H2, L), jnp.float32)
    x2_ref[...] = acc2
    y2_ref[...] = jax.nn.sigmoid(acc2)


def _vmem_policy():
    """Returns (input_tile_target_bytes, vmem_limit_bytes), generation-aware."""
    cap = None
    try:
        get_info = getattr(pltpu, "get_tpu_info", None)
        info = get_info() if get_info is not None else None
        cap = getattr(info, "vmem_capacity_bytes", None) if info is not None else None
    except Exception:
        cap = None
    if cap is not None and int(cap) >= 96 * 1024 * 1024:
        # v5e / v6e: 128 MiB physical VMEM -> bigger tiles, fewer grid steps
        return 4 * 1024 * 1024, 96 * 1024 * 1024
    # v7x (64 MiB physical) or unknown -> conservative
    return 2 * 1024 * 1024, 48 * 1024 * 1024


@functools.lru_cache(maxsize=32)
def _build_forward(N, H, W, w1_taps, w2_taps, tile_target, vmem_limit):
    assert H >= 4 and W >= 4, "need at least 4x4 spatial for 3x3 then 2x2 VALID conv"
    H1, W1 = H - 2, W - 2           # after 3x3, stride 1, pad 0
    H2, W2 = H - 3, W - 3           # after 2x2, stride 1, pad 0

    # ---- lane-dense packing: G images side-by-side, slab width 128-aligned ----
    G = max(1, LANE // W)
    L_used = G * W
    L = -(-L_used // LANE) * LANE   # multiple of 128 (>= 128)
    NG = -(-N // G)                 # number of packed groups

    # ---- batch blocking: ~tile_target input bytes, >= 4 (even) grid steps ----
    group_bytes = H * L * 4
    TB = max(1, min(NG, tile_target // group_bytes))
    if NG >= 2:
        TB = min(TB, max(1, -(-NG // 4)))     # keep >= 4 steps when batch permits
    steps = -(-NG // TB)
    if steps >= 4 and steps % 2:
        steps += 1                            # even step count for dual-TC chips
    NG_pad = steps * TB
    N_pad = NG_pad * G

    kernel = functools.partial(_simple_layer_kernel,
                               w1_taps=w1_taps, w2_taps=w2_taps)

    call = pl.pallas_call(
        kernel,
        out_shape=(
            jax.ShapeDtypeStruct((NG_pad, H1, L), jnp.float32),   # x1 (packed)
            jax.ShapeDtypeStruct((NG_pad, H1, L), jnp.float32),   # y1 (packed)
            jax.ShapeDtypeStruct((NG_pad, H2, L), jnp.float32),   # x2 (packed)
            jax.ShapeDtypeStruct((NG_pad, H2, L), jnp.float32),   # y2 (packed)
        ),
        grid_spec=pltpu.PrefetchScalarGridSpec(
            num_scalar_prefetch=0,
            grid=(steps,),
            in_specs=[pl.BlockSpec((TB, H, L), lambda g: (g, 0, 0))],
            out_specs=[
                pl.BlockSpec((TB, H1, L), lambda g: (g, 0, 0)),
                pl.BlockSpec((TB, H1, L), lambda g: (g, 0, 0)),
                pl.BlockSpec((TB, H2, L), lambda g: (g, 0, 0)),
                pl.BlockSpec((TB, H2, L), lambda g: (g, 0, 0)),
            ],
            scratch_shapes=[pltpu.VMEM((TB, H, L), jnp.float32)],
        ),
        compiler_params=pltpu.CompilerParams(
            dimension_semantics=("parallel",),
            vmem_limit_bytes=vmem_limit,
        ),
    )

    def fwd(x_nchw):
        x = x_nchw.astype(jnp.float32).reshape(N, H, W)
        if N_pad != N:
            x = jnp.concatenate(
                [x, jnp.zeros((N_pad - N, H, W), jnp.float32)], axis=0)
        # (N_pad,H,W) -> (NG_pad,G,H,W) -> (NG_pad,H,G,W) -> (NG_pad,H,L_used)
        x_p = x.reshape(NG_pad, G, H, W).transpose(0, 2, 1, 3).reshape(NG_pad, H, L_used)
        if L != L_used:
            x_p = jnp.pad(x_p, ((0, 0), (0, 0), (0, L - L_used)))

        x1_p, y1_p, x2_p, y2_p = call(x_p)

        def unpack(packed, wv):
            hv = packed.shape[1]
            cols = jnp.stack([packed[:, :, g * W: g * W + wv] for g in range(G)],
                             axis=1)                      # (NG_pad, G, hv, wv)
            cols = cols.reshape(NG_pad * G, hv, wv)[:N]   # drop batch padding
            return cols.reshape(N, 1, hv, wv)

        return [unpack(x1_p, W1), unpack(y1_p, W1),
                unpack(x2_p, W2), unpack(y2_p, W2)]

    return jax.jit(fwd)


def simple_layer_forward(x_nchw, w1, w2):
    """x_nchw: (N, 1, H, W).  Returns [x1, y1, x2, y2] in NCHW float32."""
    N, C, H, W = x_nchw.shape
    assert C == 1, "SimpleLayer's arange(9)/arange(4) init forces 1 channel everywhere"

    # Bake weights as compile-time constants (deterministic init); zero taps pruned.
    # TODO(synk): if weights ever become traced parameters (jit/grad over them),
    # add a runtime-weight fallback instead of host-side baking.
    w1_m = np.asarray(jax.device_get(w1), dtype=np.float32).reshape(3, 3)
    w2_m = np.asarray(jax.device_get(w2), dtype=np.float32).reshape(2, 2)
    w1_taps = tuple((i, j, float(w1_m[i, j]))
                    for i in range(3) for j in range(3) if float(w1_m[i, j]) != 0.0)
    w2_taps = tuple((i, j, float(w2_m[i, j]))
                    for i in range(2) for j in range(2) if float(w2_m[i, j]) != 0.0)

    tile_target, vmem_limit = _vmem_policy()
    fwd = _build_forward(N, H, W, w1_taps, w2_taps, tile_target, vmem_limit)
    return fwd(x_nchw)


def _reference_forward(x_nchw, w1, w2):
    """Pure-JAX reference using lax.conv (matches PyTorch Conv2d semantics)."""
    dn = jax.lax.conv_dimension_numbers(x_nchw.shape, (1, 1, 3, 3),
                                        ("NCHW", "OIHW", "NCHW"))
    x1 = jax.lax.conv_general_dilated(
        x_nchw.astype(jnp.float32), jnp.asarray(w1, jnp.float32).reshape(1, 1, 3, 3),
        window_strides=(1, 1), padding="VALID", dimension_numbers=dn)
    y1 = jax.nn.sigmoid(x1)
    x2 = jax.lax.conv_general_dilated(
        y1, jnp.asarray(w2, jnp.float32).reshape(1, 1, 2, 2),
        window_strides=(1, 1), padding="VALID", dimension_numbers=dn)
    y2 = jax.nn.sigmoid(x2)
    return [x1, y1, x2, y2]


if __name__ == "__main__":
    # Deterministic weights, exactly as SimpleLayer.init_weights
    w1 = (jnp.arange(9, dtype=jnp.float32) / 10.0).reshape(3, 3)
    w2 = (jnp.arange(4, dtype=jnp.float32) / 10.0).reshape(2, 2)

    key = jax.random.PRNGKey(0)
    x = jax.random.normal(key, (16, 1, 16, 16), dtype=jnp.float32)  # NCHW, C=1

    outs = simple_layer_forward(x, w1, w2)
    outs = jax.block_until_ready(outs)

    refs = _reference_forward(x, w1, w2)
    for o, r in zip(outs, refs):
        assert o.shape == r.shape and o.dtype == r.dtype
        assert jnp.allclose(o, r, rtol=1e-5, atol=1e-4), "mismatch vs reference"

    print("KERNEL_OK")
</pallas_src>

<mosaic_0001>
module attributes {stable_mosaic.version = 11 : i64} {
  func.func @_simple_layer_kernel(%arg0: i32, %arg1: memref<1x16x128xf32, #tpu.memory_space<vmem>>, %arg2: memref<1x14x128xf32, #tpu.memory_space<vmem>>, %arg3: memref<1x14x128xf32, #tpu.memory_space<vmem>>, %arg4: memref<1x13x128xf32, #tpu.memory_space<vmem>>, %arg5: memref<1x13x128xf32, #tpu.memory_space<vmem>>, %arg6: memref<1x16x128xf32, #tpu.memory_space<vmem>>) attributes {dimension_semantics = [#tpu.dimension_semantics<parallel>], iteration_bounds = array<i64: 2>, scalar_prefetch = 0 : i64, scratch_operands = 1 : i64, tpu.core_type = #tpu.core_type<tc>, window_params = [{transform_indices = @transform_0, window_bounds = array<i64: 1, 16, 128>}, {transform_indices = @transform_1, window_bounds = array<i64: 1, 14, 128>}, {transform_indices = @transform_2, window_bounds = array<i64: 1, 14, 128>}, {transform_indices = @transform_3, window_bounds = array<i64: 1, 13, 128>}, {transform_indices = @transform_4, window_bounds = array<i64: 1, 13, 128>}]} {
    %c0 = arith.constant 0 : index
    %c1 = arith.constant 1 : index
    %c0_0 = arith.constant 0 : index
    %0 = vector.load %arg1[%c0, %c1, %c0_0] : memref<1x16x128xf32, #tpu.memory_space<vmem>>, vector<1x14x128xf32>
    %cst = arith.constant 3.000000e-01 : f32
    %1 = vector.broadcast %cst : f32 to vector<1x14x128xf32>
    %2 = arith.mulf %1, %0 : vector<1x14x128xf32>
    %c0_1 = arith.constant 0 : index
    %c2 = arith.constant 2 : index
    %c0_2 = arith.constant 0 : index
    %3 = vector.load %arg1[%c0_1, %c2, %c0_2] : memref<1x16x128xf32, #tpu.memory_space<vmem>>, vector<1x14x128xf32>
    %cst_3 = arith.constant 6.000000e-01 : f32
    %4 = vector.broadcast %cst_3 : f32 to vector<1x14x128xf32>
    %5 = arith.mulf %4, %3 : vector<1x14x128xf32>
    %6 = arith.addf %2, %5 : vector<1x14x128xf32>
    %c0_4 = arith.constant 0 : index
    %c0_5 = arith.constant 0 : index
    %c1_6 = arith.constant 1 : index
    %7 = vector.load %arg1[%c0_4, %c0_5, %c1_6] : memref<1x16x128xf32, #tpu.memory_space<vmem>>, vector<1x16x127xf32>
    %c0_7 = arith.constant 0 : index
    %c0_8 = arith.constant 0 : index
    %c0_9 = arith.constant 0 : index
    %8 = vector.load %arg6[%c0_7, %c0_8, %c0_9] : memref<1x16x128xf32, #tpu.memory_space<vmem>>, vector<1x16x127xf32>
    tpu.vector_store %arg6[%c0_7, %c0_8, %c0_9], %7 {strides = array<i32>} : memref<1x16x128xf32, #tpu.memory_space<vmem>>, vector<1x16x127xf32>,
    %c0_10 = arith.constant 0 : index
    %c0_11 = arith.constant 0 : index
    %c0_12 = arith.constant 0 : index
    %9 = vector.load %arg6[%c0_10, %c0_11, %c0_12] : memref<1x16x128xf32, #tpu.memory_space<vmem>>, vector<1x14x128xf32>
    %cst_13 = arith.constant 1.000000e-01 : f32
    %10 = vector.broadcast %cst_13 : f32 to vector<1x14x128xf32>
    %11 = arith.mulf %10, %9 : vector<1x14x128xf32>
    %12 = arith.addf %6, %11 : vector<1x14x128xf32>
    %c0_14 = arith.constant 0 : index
    %c1_15 = arith.constant 1 : index
    %c0_16 = arith.constant 0 : index
    %13 = vector.load %arg6[%c0_14, %c1_15, %c0_16] : memref<1x16x128xf32, #tpu.memory_space<vmem>>, vector<1x14x128xf32>
    %cst_17 = arith.constant 4.000000e-01 : f32
    %14 = vector.broadcast %cst_17 : f32 to vector<1x14x128xf32>
    %15 = arith.mulf %14, %13 : vector<1x14x128xf32>
    %16 = arith.addf %12, %15 : vector<1x14x128xf32>
    %c0_18 = arith.constant 0 : index
    %c2_19 = arith.constant 2 : index
    %c0_20 = arith.constant 0 : index
    %17 = vector.load %arg6[%c0_18, %c2_19, %c0_20] : memref<1x16x128xf32, #tpu.memory_space<vmem>>, vector<1x14x128xf32>
    %cst_21 = arith.constant 0.699999988 : f32
    %18 = vector.broadcast %cst_21 : f32 to vector<1x14x128xf32>
    %19 = arith.mulf %18, %17 : vector<1x14x128xf32>
    %20 = arith.addf %16, %19 : vector<1x14x128xf32>
    %c0_22 = arith.constant 0 : index
    %c0_23 = arith.constant 0 : index
    %c2_24 = arith.constant 2 : index
    %21 = vector.load %arg1[%c0_22, %c0_23, %c2_24] : memref<1x16x128xf32, #tpu.memory_space<vmem>>, vector<1x16x126xf32>
    %c0_25 = arith.constant 0 : index
    %c0_26 = arith.constant 0 : index
    %c0_27 = arith.constant 0 : index
    %22 = vector.load %arg6[%c0_25, %c0_26, %c0_27] : memref<1x16x128xf32, #tpu.memory_space<vmem>>, vector<1x16x126xf32>
    tpu.vector_store %arg6[%c0_25, %c0_26, %c0_27], %21 {strides = array<i32>} : memref<1x16x128xf32, #tpu.memory_space<vmem>>, vector<1x16x126xf32>,
    %c0_28 = arith.constant 0 : index
    %c0_29 = arith.constant 0 : index
    %c0_30 = arith.constant 0 : index
    %23 = vector.load %arg6[%c0_28, %c0_29, %c0_30] : memref<1x16x128xf32, #tpu.memory_space<vmem>>, vector<1x14x128xf32>
    %cst_31 = arith.constant 2.000000e-01 : f32
    %24 = vector.broadcast %cst_31 : f32 to vector<1x14x128xf32>
    %25 = arith.mulf %24, %23 : vector<1x14x128xf32>
    %26 = arith.addf %20, %25 : vector<1x14x128xf32>
    %c0_32 = arith.constant 0 : index
    %c1_33 = arith.constant 1 : index
    %c0_34 = arith.constant 0 : index
    %27 = vector.load %arg6[%c0_32, %c1_33, %c0_34] : memref<1x16x128xf32, #tpu.memory_space<vmem>>, vector<1x14x128xf32>
    %cst_35 = arith.constant 5.000000e-01 : f32
    %28 = vector.broadcast %cst_35 : f32 to vector<1x14x128xf32>
    %29 = arith.mulf %28, %27 : vector<1x14x128xf32>
    %30 = arith.addf %26, %29 : vector<1x14x128xf32>
    %c0_36 = arith.constant 0 : index
    %c2_37 = arith.constant 2 : index
    %c0_38 = arith.constant 0 : index
    %31 = vector.load %arg6[%c0_36, %c2_37, %c0_38] : memref<1x16x128xf32, #tpu.memory_space<vmem>>, vector<1x14x128xf32>
    %cst_39 = arith.constant 8.000000e-01 : f32
    %32 = vector.broadcast %cst_39 : f32 to vector<1x14x128xf32>
    %33 = arith.mulf %32, %31 : vector<1x14x128xf32>
    %34 = arith.addf %30, %33 : vector<1x14x128xf32>
    %35 = arith.negf %34 : vector<1x14x128xf32>
    %36 = math.exp %35 : vector<1x14x128xf32>
    %cst_40 = arith.constant 1.000000e+00 : f32
    %37 = vector.broadcast %cst_40 : f32 to vector<1x14x128xf32>
    %38 = arith.addf %37, %36 : vector<1x14x128xf32>
    %39 = arith.divf %37, %38 : vector<1x14x128xf32>
    %c0_41 = arith.constant 0 : index
    %c0_42 = arith.constant 0 : index
    %c0_43 = arith.constant 0 : index
    %40 = vector.load %arg2[%c0_41, %c0_42, %c0_43] : memref<1x14x128xf32, #tpu.memory_space<vmem>>, vector<1x14x128xf32>
    tpu.vector_store %arg2[%c0_41, %c0_42, %c0_43], %34 {strides = array<i32>} : memref<1x14x128xf32, #tpu.memory_space<vmem>>, vector<1x14x128xf32>,
    %c0_44 = arith.constant 0 : index
    %c0_45 = arith.constant 0 : index
    %c0_46 = arith.constant 0 : index
    %41 = vector.load %arg3[%c0_44, %c0_45, %c0_46] : memref<1x14x128xf32, #tpu.memory_space<vmem>>, vector<1x14x128xf32>
    tpu.vector_store %arg3[%c0_44, %c0_45, %c0_46], %39 {strides = array<i32>} : memref<1x14x128xf32, #tpu.memory_space<vmem>>, vector<1x14x128xf32>,
    %42 = vector.extract_strided_slice %39 {offsets = [0, 1, 0], sizes = [1, 13, 128], strides = [1, 1, 1]} : vector<1x14x128xf32> to vector<1x13x128xf32>
    %cst_47 = arith.constant 2.000000e-01 : f32
    %43 = vector.broadcast %cst_47 : f32 to vector<1x13x128xf32>
    %44 = arith.mulf %43, %42 : vector<1x13x128xf32>
    %45 = vector.extract_strided_slice %39 {offsets = [0, 0, 1], sizes = [1, 14, 127], strides = [1, 1, 1]} : vector<1x14x128xf32> to vector<1x14x127xf32>
    %c0_48 = arith.constant 0 : index
    %c0_49 = arith.constant 0 : index
    %c0_50 = arith.constant 0 : index
    %46 = vector.load %arg6[%c0_48, %c0_49, %c0_50] : memref<1x16x128xf32, #tpu.memory_space<vmem>>, vector<1x14x127xf32>
    tpu.vector_store %arg6[%c0_48, %c0_49, %c0_50], %45 {strides = array<i32>} : memref<1x16x128xf32, #tpu.memory_space<vmem>>, vector<1x14x127xf32>,
    %c0_51 = arith.constant 0 : index
    %c0_52 = arith.constant 0 : index
    %c0_53 = arith.constant 0 : index
    %47 = vector.load %arg6[%c0_51, %c0_52, %c0_53] : memref<1x16x128xf32, #tpu.memory_space<vmem>>, vector<1x13x128xf32>
    %cst_54 = arith.constant 1.000000e-01 : f32
    %48 = vector.broadcast %cst_54 : f32 to vector<1x13x128xf32>
    %49 = arith.mulf %48, %47 : vector<1x13x128xf32>
    %50 = arith.addf %44, %49 : vector<1x13x128xf32>
    %c0_55 = arith.constant 0 : index
    %c1_56 = arith.constant 1 : index
    %c0_57 = arith.constant 0 : index
    %51 = vector.load %arg6[%c0_55, %c1_56, %c0_57] : memref<1x16x128xf32, #tpu.memory_space<vmem>>, vector<1x13x128xf32>
    %cst_58 = arith.constant 3.000000e-01 : f32
    %52 = vector.broadcast %cst_58 : f32 to vector<1x13x128xf32>
    %53 = arith.mulf %52, %51 : vector<1x13x128xf32>
    %54 = arith.addf %50, %53 : vector<1x13x128xf32>
    %c0_59 = arith.constant 0 : index
    %c0_60 = arith.constant 0 : index
    %c0_61 = arith.constant 0 : index
    %55 = vector.load %arg4[%c0_59, %c0_60, %c0_61] : memref<1x13x128xf32, #tpu.memory_space<vmem>>, vector<1x13x128xf32>
    tpu.vector_store %arg4[%c0_59, %c0_60, %c0_61], %54 {strides = array<i32>} : memref<1x13x128xf32, #tpu.memory_space<vmem>>, vector<1x13x128xf32>,
    %56 = arith.negf %54 : vector<1x13x128xf32>
    %57 = math.exp %56 : vector<1x13x128xf32>
    %cst_62 = arith.constant 1.000000e+00 : f32
    %58 = vector.broadcast %cst_62 : f32 to vector<1x13x128xf32>
    %59 = arith.addf %58, %57 : vector<1x13x128xf32>
    %60 = arith.divf %58, %59 : vector<1x13x128xf32>
    %c0_63 = arith.constant 0 : index
    %c0_64 = arith.constant 0 : index
    %c0_65 = arith.constant 0 : index
    %61 = vector.load %arg5[%c0_63, %c0_64, %c0_65] : memref<1x13x128xf32, #tpu.memory_space<vmem>>, vector<1x13x128xf32>
    tpu.vector_store %arg5[%c0_63, %c0_64, %c0_65], %60 {strides = array<i32>} : memref<1x13x128xf32, #tpu.memory_space<vmem>>, vector<1x13x128xf32>,
    return
  }
  func.func @transform_0(%arg0: i32) -> (i32, i32, i32) {
    %c0_i32 = arith.constant 0 : i32
    %c0_i32_0 = arith.constant 0 : i32
    %c0_i32_1 = arith.constant 0 : i32
    return %arg0, %c0_i32, %c0_i32_0 : i32, i32, i32
  }
  func.func @transform_1(%arg0: i32) -> (i32, i32, i32) {
    %c0_i32 = arith.constant 0 : i32
    %c0_i32_0 = arith.constant 0 : i32
    %c0_i32_1 = arith.constant 0 : i32
    return %arg0, %c0_i32, %c0_i32_0 : i32, i32, i32
  }
  func.func @transform_2(%arg0: i32) -> (i32, i32, i32) {
    %c0_i32 = arith.constant 0 : i32
    %c0_i32_0 = arith.constant 0 : i32
    %c0_i32_1 = arith.constant 0 : i32
    return %arg0, %c0_i32, %c0_i32_0 : i32, i32, i32
  }
  func.func @transform_3(%arg0: i32) -> (i32, i32, i32) {
    %c0_i32 = arith.constant 0 : i32
    %c0_i32_0 = arith.constant 0 : i32
    %c0_i32_1 = arith.constant 0 : i32
    return %arg0, %c0_i32, %c0_i32_0 : i32, i32, i32
  }
  func.func @transform_4(%arg0: i32) -> (i32, i32, i32) {
    %c0_i32 = arith.constant 0 : i32
    %c0_i32_0 = arith.constant 0 : i32
    %c0_i32_1 = arith.constant 0 : i32
    return %arg0, %c0_i32, %c0_i32_0 : i32, i32, i32
  }
}

</mosaic_0001>

<llo_original>
// kernel: fwd.1
$region0: #{fwd.1}
  #allocation0 [shape = 'u32[]', space=smem, size = 0x4, offset = 0x4, fixed_abs, tag = 'smem constant byte address 0x4 - core index']
  #allocation1 [shape = 'u32[72,128]{1,0:T(1,128)}', space=vmem, size = 0x9000, scoped, tag = 'internal scratch']
  #allocation2 [shape = 'f32[1,16,128]{2,1,0:T(8,128)}', space=vmem, size = 0x2000, scoped, tag = 'scratch operand']
  %s0 = inlined_call_operand.vmem [shape: f32[2,16,128], index: 0, kind: input, shape index: {}]
  %s1 = inlined_call_operand.vmem [shape: f32[2,14,128], index: 1, kind: output, shape index: {0}]
  %s2 = inlined_call_operand.vmem [shape: f32[2,14,128], index: 2, kind: output, shape index: {1}]
  %s3 = inlined_call_operand.vmem [shape: f32[2,13,128], index: 3, kind: output, shape index: {2}]
  %s4 = inlined_call_operand.vmem [shape: f32[2,13,128], index: 4, kind: output, shape index: {3}]
  %5 = xla_tuple %s1, %s2, %s3, %s4
  %s6 = sld [smem:[#allocation0]]
  $region61: #{fwd.1} parent=0
    _
  %s8 = ssub.s32 1, %s6
  %s9 = scalar_select 0, %s8, %s6
  loop: start=0, step=1, limit=4
  $region2: #{fwd.1} parent=0 // loop_pre_header
    _
  $region3: #{fwd.1} parent=0 // loop_header
    %s11 = sphi 0, %s15
    %p12 = scmp.ge.s32.totalorder %s11, 4
    %s21 = sphi 0, %s23
    %s24 = sphi 0, %s21
    %s25 = sphi 0, %s24
    %s41 = sphi 0, %s25
    %s47 = sphi 0, %s49
    %s50 = sphi 0, %s47
    %s51 = sphi 0, %s50
    %s67 = sphi 0, %s51
    %s73 = sphi 0, %s75
    %s76 = sphi 0, %s73
    %s77 = sphi 0, %s76
    %s93 = sphi 0, %s77
    %s99 = sphi 0, %s101
    %s102 = sphi 0, %s99
    %s103 = sphi 0, %s102
    %s119 = sphi 0, %s103
    %s125 = sphi 0, %s127
    %s128 = sphi 0, %s125
    %s129 = sphi 0, %s128
    %s145 = sphi 0, %s129
  $region4: #{fwd.1} parent=0 // loop_header_branch
    %14 = sbr.rel (%p12) target = $region8
  $region5: #{fwd.1} parent=0 // loop_body
    %s16 = ssub.s32 %s11, 1
    %s17 = ssub.s32 %s11, 2
    %s18 = sadd.s32 %s11, 1
    %s19 = ssub.s32 %s11, %s18
    %p20 = scmp.eq.s32.totalorder %s19, 0
    %s22 = sadd.s32 %s21, 1
    %s23 = scalar_select %p20, %s21, %s22
    %p26 = pneg %p20
    %p27 = scmp.eq.s32.totalorder %s11, 1
    %p28 = por %p26, %p27
    %p29 = scmp.ne.s32.totalorder %s21, %s24
    %p30 = scmp.eq.s32.totalorder %s11, 0
    %p31 = por %p29, %p30
    %p32 = scmp.ne.s32.totalorder %s21, %s24
    %p33 = scmp.eq.s32.totalorder %s16, 1
    %p34 = por %p32, %p33
    %p35 = scmp.ne.s32.totalorder %s24, %s25
    %p36 = scmp.eq.s32.totalorder %s16, 0
    %p37 = por %p35, %p36
    %p38 = scmp.ne.s32.totalorder %s24, %s25
    %p39 = scmp.eq.s32.totalorder %s17, 1
    %p40 = por %p38, %p39
    %p42 = scmp.ne.s32.totalorder %s25, %s41
    %p43 = scmp.eq.s32.totalorder %s17, 0
    %p44 = por %p42, %p43
    %s45 = ssub.s32 %s11, %s18
    %p46 = scmp.eq.s32.totalorder %s45, 0
    %s48 = sadd.s32 %s47, 1
    %s49 = scalar_select %p46, %s47, %s48
    %p52 = pneg %p46
    %p53 = scmp.eq.s32.totalorder %s11, 1
    %p54 = por %p52, %p53
    %p55 = scmp.ne.s32.totalorder %s47, %s50
    %p56 = scmp.eq.s32.totalorder %s11, 0
    %p57 = por %p55, %p56
    %p58 = scmp.ne.s32.totalorder %s47, %s50
    %p59 = scmp.eq.s32.totalorder %s16, 1
    %p60 = por %p58, %p59
    %p61 = scmp.ne.s32.totalorder %s50, %s51
    %p62 = scmp.eq.s32.totalorder %s16, 0
    %p63 = por %p61, %p62
    %p64 = scmp.ne.s32.totalorder %s50, %s51
    %p65 = scmp.eq.s32.totalorder %s17, 1
    %p66 = por %p64, %p65
    %p68 = scmp.ne.s32.totalorder %s51, %s67
    %p69 = scmp.eq.s32.totalorder %s17, 0
    %p70 = por %p68, %p69
    %s71 = ssub.s32 %s11, %s18
    %p72 = scmp.eq.s32.totalorder %s71, 0
    %s74 = sadd.s32 %s73, 1
    %s75 = scalar_select %p72, %s73, %s74
    %p78 = pneg %p72
    %p79 = scmp.eq.s32.totalorder %s11, 1
    %p80 = por %p78, %p79
    %p81 = scmp.ne.s32.totalorder %s73, %s76
    %p82 = scmp.eq.s32.totalorder %s11, 0
    %p83 = por %p81, %p82
    %p84 = scmp.ne.s32.totalorder %s73, %s76
    %p85 = scmp.eq.s32.totalorder %s16, 1
    %p86 = por %p84, %p85
    %p87 = scmp.ne.s32.totalorder %s76, %s77
    %p88 = scmp.eq.s32.totalorder %s16, 0
    %p89 = por %p87, %p88
    %p90 = scmp.ne.s32.totalorder %s76, %s77
    %p91 = scmp.eq.s32.totalorder %s17, 1
    %p92 = por %p90, %p91
    %p94 = scmp.ne.s32.totalorder %s77, %s93
    %p95 = scmp.eq.s32.totalorder %s17, 0
    %p96 = por %p94, %p95
    %s97 = ssub.s32 %s11, %s18
    %p98 = scmp.eq.s32.totalorder %s97, 0
    %s100 = sadd.s32 %s99, 1
    %s101 = scalar_select %p98, %s99, %s100
    %p104 = pneg %p98
    %p105 = scmp.eq.s32.totalorder %s11, 1
    %p106 = por %p104, %p105
    %p107 = scmp.ne.s32.totalorder %s99, %s102
    %p108 = scmp.eq.s32.totalorder %s11, 0
    %p109 = por %p107, %p108
    %p110 = scmp.ne.s32.totalorder %s99, %s102
    %p111 = scmp.eq.s32.totalorder %s16, 1
    %p112 = por %p110, %p111
    %p113 = scmp.ne.s32.totalorder %s102, %s103
    %p114 = scmp.eq.s32.totalorder %s16, 0
    %p115 = por %p113, %p114
    %p116 = scmp.ne.s32.totalorder %s102, %s103
    %p117 = scmp.eq.s32.totalorder %s17, 1
    %p118 = por %p116, %p117
    %p120 = scmp.ne.s32.totalorder %s103, %s119
    %p121 = scmp.eq.s32.totalorder %s17, 0
    %p122 = por %p120, %p121
    %s123 = ssub.s32 %s11, %s18
    %p124 = scmp.eq.s32.totalorder %s123, 0
    %s126 = sadd.s32 %s125, 1
    %s127 = scalar_select %p124, %s125, %s126
    %p130 = pneg %p124
    %p131 = scmp.eq.s32.totalorder %s11, 1
    %p132 = por %p130, %p131
    %p133 = scmp.ne.s32.totalorder %s125, %s128
    %p134 = scmp.eq.s32.totalorder %s11, 0
    %p135 = por %p133, %p134
    %p136 = scmp.ne.s32.totalorder %s125, %s128
    %p137 = scmp.eq.s32.totalorder %s16, 1
    %p138 = por %p136, %p137
    %p139 = scmp.ne.s32.totalorder %s128, %s129
    %p140 = scmp.eq.s32.totalorder %s16, 0
    %p141 = por %p139, %p140
    %p142 = scmp.ne.s32.totalorder %s128, %s129
    %p143 = scmp.eq.s32.totalorder %s17, 1
    %p144 = por %p142, %p143
    %p146 = scmp.ne.s32.totalorder %s129, %s145
    %p147 = scmp.eq.s32.totalorder %s17, 0
    %p148 = por %p146, %p147
    %p149 = scmp.le.s32.totalorder 1, %s11
    %p150 = scmp.lt.s32.totalorder %s11, 3
    %p151 = pnand %p149, %p150
    %p152 = pneg %p151
    // Predicated region
    $region9: #{fwd.1} parent=5 // pred_check
      _
    $region10: #{fwd.1} parent=5 // pred_check_branch
      %154 = sbr.rel (%p151) target = $region12
    $region11: #{fwd.1} parent=5 // pred_region
      %s155 = ssub.s32 %s11, 1
    $region12: #{fwd.1} parent=5 // pred_fallthru
      _
    %p156 = scmp.lt.s32.totalorder %s11, 2
    // Predicated region
    $region13: #{fwd.1} parent=5 // pred_check
      %p157 = pneg %p156
    $region14: #{fwd.1} parent=5 // pred_check_branch
      %159 = sbr.rel (%p157) target = $region16
    $region15: #{fwd.1} parent=5 // pred_region
      // Predicated region
      $region17: #{fwd.1} parent=15 // pred_check
        %p160 = pneg %p31
      $region18: #{fwd.1} parent=15 // pred_check_branch
        %162 = sbr.rel (%p160) target = $region20
      $region19: #{fwd.1} parent=15 // pred_region
        %p163 = scmp.lt.s32.totalorder %s11, 1
        %s164 = scalar_select %p163, %s11, 1
        %s165 = smul.addr %s164, 2
        %s166 = smul.addr %s165, 8
        %s167 = scalar_lea.vmem %s0, %s166
      $region20: #{fwd.1} parent=15 // pred_fallthru
        _
    $region16: #{fwd.1} parent=5 // pred_fallthru
      _
    %p168 = scmp.le.s32.totalorder 1, %s11
    %p169 = scmp.lt.s32.totalorder %s11, 3
    %p170 = pnand %p168, %p169
    %p171 = pneg %p170
    // Predicated region
    $region21: #{fwd.1} parent=5 // pred_check
      _
    $region22: #{fwd.1} parent=5 // pred_check_branch
      %173 = sbr.rel (%p170) target = $region24
    $region23: #{fwd.1} parent=5 // pred_region
      %s174 = ssub.s32 %s11, 1
      %p175 = scmp.lt.s32.totalorder %s16, 1
      %s176 = scalar_select %p175, %s16, 1
      %s177 = smul.addr %s176, 2
      %s178 = smul.addr %s177, 8
      %s179 = scalar_lea.vmem %s0, %s178
      %p180 = pneg %p37
      %p181 = pneg %p34
      %p182 = pneg %p63
      %p183 = pneg %p60
      %p184 = scmp.lt.s32.totalorder %s16, 1
      %s185 = scalar_select %p184, %s16, 1
      %s186 = smul.addr %s185, 2
      %s187 = smul.addr %s186, 8
      %s188 = scalar_lea.vmem %s1, %s187
      %p189 = pneg %p89
      %p190 = pneg %p86
      %p191 = scmp.lt.s32.totalorder %s16, 1
      %s192 = scalar_select %p191, %s16, 1
      %s193 = smul.addr %s192, 2
      %s194 = smul.addr %s193, 8
      %s195 = scalar_lea.vmem %s2, %s194
      %p196 = pneg %p115
      %p197 = pneg %p112
      %p198 = scmp.lt.s32.totalorder %s16, 1
      %s199 = scalar_select %p198, %s16, 1
      %s200 = smul.addr %s199, 2
      %s201 = smul.addr %s200, 8
      %s202 = scalar_lea.vmem %s3, %s201
      %p203 = pneg %p141
      %p204 = pneg %p138
      %p205 = scmp.lt.s32.totalorder %s16, 1
      %s206 = scalar_select %p205, %s16, 1
      %s207 = smul.addr %s206, 2
      %s208 = smul.addr %s207, 8
      %s209 = scalar_lea.vmem %s4, %s208
      %p210 = scmp.lt.s32.totalorder %s16, 1
      %s211 = scalar_select %p210, %s16, 1
      %s212 = smul.addr %s211, 2
      %s213 = smul.addr %s212, 8
      %s214 = scalar_lea.vmem %s0, %s213
      %p215 = scmp.lt.s32.totalorder %s16, 1
      %s216 = scalar_select %p215, %s16, 1
      %s217 = smul.addr %s216, 2
      %s218 = smul.addr %s217, 8
      %s219 = scalar_lea.vmem %s1, %s218
      %p220 = scmp.lt.s32.totalorder %s16, 1
      %s221 = scalar_select %p220, %s16, 1
      %s222 = smul.addr %s221, 2
      %s223 = smul.addr %s222, 8
      %s224 = scalar_lea.vmem %s2, %s223
      %p225 = scmp.lt.s32.totalorder %s16, 1
      %s226 = scalar_select %p225, %s16, 1
      %s227 = smul.addr %s226, 2
      %s228 = smul.addr %s227, 8
      %s229 = scalar_lea.vmem %s3, %s228
      %p230 = scmp.lt.s32.totalorder %s16, 1
      %s231 = scalar_select %p230, %s16, 1
      %s232 = smul.addr %s231, 2
      %s233 = smul.addr %s232, 8
      %s234 = scalar_lea.vmem %s4, %s233
      %v235 = vld [vmem:[%s214 + $0x1] sm:$0xff]
      %v236 = vld [vmem:[%s214 + $0x9] sm:$0x3f]
      %v237 = vmul.f32 %v235, 0.3
      %v238 = vmul.f32 %v236, 0.3
      %v239 = vld [vmem:[%s214 + $0x2] sm:$0xff]
      %v240 = vld [vmem:[%s214 + $0xa] sm:$0x3f]
      %v241 = vmul.f32 %v239, 0.6
      %v242 = vmul.f32 %v240, 0.6
      %v243 = vadd.f32 %v237, %v241
      %v244 = vadd.f32 %v238, %v242
      %v245 = vld [vmem:[%s214] sm:$0xff]
      %v246 = vld [vmem:[%s214 + $0x8] sm:$0xff]
      %249 = vrot.lane.b32.xlu0 %v245, 127
      %v250 = vpop.permute.xlu0 %249
      %251 = vrot.lane.b32.xlu0 %v246, 127
      %v252 = vpop.permute.xlu0 %251
      %vm255 = vcmask 1039360
      %256 = vst.msk [vmem:[#allocation2] sm:$0xff] %vm255, %v250
      %257 = vst.msk [vmem:[#allocation2 + $0x8] sm:$0xff] %vm255, %v252
      %v258 = vld [vmem:[#allocation2] sm:$0xff]
      %v259 = vld [vmem:[#allocation2 + $0x8] sm:$0x3f]
      %v260 = vmul.f32 %v258, 0.1
      %v261 = vmul.f32 %v259, 0.1
      %v262 = vadd.f32 %v243, %v260
      %v263 = vadd.f32 %v244, %v261
      %v264 = vld [vmem:[#allocation2 + $0x1] sm:$0xff]
      %v265 = vld [vmem:[#allocation2 + $0x9] sm:$0x3f]
      %v266 = vmul.f32 %v264, 0.4
      %v267 = vmul.f32 %v265, 0.4
      %v268 = vadd.f32 %v262, %v266
      %v269 = vadd.f32 %v263, %v267
      %v270 = vld [vmem:[#allocation2 + $0x2] sm:$0xff]
      %v271 = vld [vmem:[#allocation2 + $0xa] sm:$0x3f]
      %v272 = vmul.f32 %v270, 0.7
      %v273 = vmul.f32 %v271, 0.7
      %v274 = vadd.f32 %v268, %v272
      %v275 = vadd.f32 %v269, %v273
      %v276 = vld [vmem:[%s214] sm:$0xff]
      %v277 = vld [vmem:[%s214 + $0x8] sm:$0xff]
      %280 = vrot.lane.b32.xlu0 %v276, 126
      %v281 = vpop.permute.xlu0 %280
      %282 = vrot.lane.b32.xlu0 %v277, 126
      %v283 = vpop.permute.xlu0 %282
      %vm286 = vcmask 1031168
      %287 = vst.msk [vmem:[#allocation2] sm:$0xff] %vm286, %v281
      %288 = vst.msk [vmem:[#allocation2 + $0x8] sm:$0xff] %vm286, %v283
      %v289 = vld [vmem:[#allocation2] sm:$0xff]
      %v290 = vld [vmem:[#allocation2 + $0x8] sm:$0x3f]
      %v291 = vmul.f32 %v289, 0.2
      %v292 = vmul.f32 %v290, 0.2
      %v293 = vadd.f32 %v274, %v291
      %v294 = vadd.f32 %v275, %v292
      %v295 = vld [vmem:[#allocation2 + $0x1] sm:$0xff]
      %v296 = vld [vmem:[#allocation2 + $0x9] sm:$0x3f]
      %v297 = vmul.f32 %v295, 0.5
      %v298 = vmul.f32 %v296, 0.5
      %v299 = vadd.f32 %v293, %v297
      %v300 = vadd.f32 %v294, %v298
      %v301 = vld [vmem:[#allocation2 + $0x2] sm:$0xff]
      %v302 = vld [vmem:[#allocation2 + $0xa] sm:$0x3f]
      %v303 = vmul.f32 %v301, 0.8
      %v304 = vmul.f32 %v302, 0.8
      %v305 = vadd.f32 %v299, %v303
      %v306 = vadd.f32 %v300, %v304
      %v307 = vxor.u32 %v305, 2147483648
      %v308 = vxor.u32 %v306, 2147483648
      %v309 = vmul.f32 %v307, 1.442695
      %v310 = vpow.pop %v309
      %v311 = vmul.f32 %v308, 1.442695
      %v312 = vpow.pop %v311
      %v313 = vadd.f32 %v310, 1.0
      %v314 = vadd.f32 %v312, 1.0
      %v315 = vrcp.pop %v313
      %v316 = vmul.f32 %v313, %v315
      %v317 = vsub.f32 1.0, %v316
      %v318 = vmul.f32 %v315, %v317
      %v319 = vadd.f32 %v315, %v318
      %vm320 = vweird.f32 %v313
      %vm321 = vweird.f32 %v315
      %vm322 = vmor %vm320, %vm321
      %v323 = vsel %vm322, %v315, %v319
      %v324 = vand.u32 2147483647, %v313
      %vm325 = vcmp.eq.f32.partialorder %v324, 8.507059e+37
      %v326 = vand.u32 %v313, 2147483648
      %v327 = vor.u32 1.1754944e-38, %v326
      %v328 = vsel %vm325, %v327, %v323
      %v329 = vmul.f32 1.0, %v328
      %v330 = vrcp.pop %v314
      %v331 = vmul.f32 %v314, %v330
      %v332 = vsub.f32 1.0, %v331
      %v333 = vmul.f32 %v330, %v332
      %v334 = vadd.f32 %v330, %v333
      %vm335 = vweird.f32 %v314
      %vm336 = vweird.f32 %v330
      %vm337 = vmor %vm335, %vm336
      %v338 = vsel %vm337, %v330, %v334
      %v339 = vand.u32 2147483647, %v314
      %vm340 = vcmp.eq.f32.partialorder %v339, 8.507059e+37
      %v341 = vand.u32 %v314, 2147483648
      %v342 = vor.u32 1.1754944e-38, %v341
      %v343 = vsel %vm340, %v342, %v338
      %v344 = vmul.f32 1.0, %v343
      %345 = vst [vmem:[%s219] sm:$0xff] %v305
      %346 = vst [vmem:[%s219 + $0x8] sm:$0x3f] %v306
      %347 = vst [vmem:[%s224] sm:$0xff] %v329
      %348 = vst [vmem:[%s224 + $0x8] sm:$0x3f] %v344
      %v349 = vmul.f32 %v329, 0.2
      %v350 = vmul.f32 %v344, 0.2
      %353 = vrot.lane.b32.xlu0 %v329, 127
      %v354 = vpop.permute.xlu0 %353
      %355 = vrot.lane.b32.xlu0 %v344, 127
      %v356 = vpop.permute.xlu0 %355
      %359 = vst.msk [vmem:[#allocation2] sm:$0xff] %vm255, %v354
      %vm360 = vcmask 1037312
      %361 = vst.msk [vmem:[#allocation2 + $0x8] sm:$0x3f] %vm360, %v356
      %v362 = vld [vmem:[#allocation2] sm:$0xff]
      %v363 = vld [vmem:[#allocation2 + $0x8] sm:$0x1f]
      %v364 = vmul.f32 %v362, 0.1
      %v365 = vmul.f32 %v363, 0.1
      %vm368 = vcmask 1040384
      %v369 = vrot.slane %v364, 7
      %v370 = vrot.slane %v365, 7
      %v371 = vsel %vm368, %v369, %v370
      %v374 = vadd.f32 %v349, %v369
      %v375 = vadd.f32 %v350, %v371
      %v376 = vld [vmem:[#allocation2 + $0x1] sm:$0xff]
      %v377 = vld [vmem:[#allocation2 + $0x9] sm:$0x1f]
      %v378 = vmul.f32 %v376, 0.3
      %v379 = vmul.f32 %v377, 0.3
      %v382 = vrot.slane %v378, 7
      %v383 = vrot.slane %v379, 7
      %v384 = vsel %vm368, %v382, %v383
      %v387 = vadd.f32 %v374, %v382
      %v388 = vadd.f32 %v375, %v384
      %389 = vst [vmem:[%s229 - $0x1] sm:$0xfe] %v387
      %390 = vst [vmem:[%s229 + $0x7] sm:$0x3f] %v388
      %v391 = vxor.u32 %v387, 2147483648
      %v392 = vxor.u32 %v388, 2147483648
      %v393 = vmul.f32 %v391, 1.442695
      %v394 = vpow.pop %v393
      %v395 = vmul.f32 %v392, 1.442695
      %v396 = vpow.pop %v395
      %v397 = vadd.f32 %v394, 1.0
      %v398 = vadd.f32 %v396, 1.0
      %v399 = vrcp.pop %v397
      %v400 = vmul.f32 %v397, %v399
      %v401 = vsub.f32 1.0, %v400
      %v402 = vmul.f32 %v399, %v401
      %v403 = vadd.f32 %v399, %v402
      %vm404 = vweird.f32 %v397
      %vm405 = vweird.f32 %v399
      %vm406 = vmor %vm404, %vm405
      %v407 = vsel %vm406, %v399, %v403
      %v408 = vand.u32 2147483647, %v397
      %vm409 = vcmp.eq.f32.partialorder %v408, 8.507059e+37
      %v410 = vand.u32 %v397, 2147483648
      %v411 = vor.u32 1.1754944e-38, %v410
      %v412 = vsel %vm409, %v411, %v407
      %v413 = vmul.f32 1.0, %v412
      %v414 = vrcp.pop %v398
      %v415 = vmul.f32 %v398, %v414
      %v416 = vsub.f32 1.0, %v415
      %v417 = vmul.f32 %v414, %v416
      %v418 = vadd.f32 %v414, %v417
      %vm419 = vweird.f32 %v398
      %vm420 = vweird.f32 %v414
      %vm421 = vmor %vm419, %vm420
      %v422 = vsel %vm421, %v414, %v418
      %v423 = vand.u32 2147483647, %v398
      %vm424 = vcmp.eq.f32.partialorder %v423, 8.507059e+37
      %v425 = vand.u32 %v398, 2147483648
      %v426 = vor.u32 1.1754944e-38, %v425
      %v427 = vsel %vm424, %v426, %v422
      %v428 = vmul.f32 1.0, %v427
      %429 = vst [vmem:[%s234 - $0x1] sm:$0xfe] %v413
      %430 = vst [vmem:[%s234 + $0x7] sm:$0x3f] %v428
      %p431 = scmp.lt.s32.totalorder %s16, 1
      %s432 = scalar_select %p431, %s16, 1
      %s433 = smul.addr %s432, 2
      %s434 = smul.addr %s433, 8
      %s435 = scalar_lea.vmem %s1, %s434
      %p436 = scmp.lt.s32.totalorder %s16, 1
      %s437 = scalar_select %p436, %s16, 1
      %s438 = smul.addr %s437, 2
      %s439 = smul.addr %s438, 8
      %s440 = scalar_lea.vmem %s2, %s439
      %p441 = scmp.lt.s32.totalorder %s16, 1
      %s442 = scalar_select %p441, %s16, 1
      %s443 = smul.addr %s442, 2
      %s444 = smul.addr %s443, 8
      %s445 = scalar_lea.vmem %s3, %s444
      %p446 = scmp.lt.s32.totalorder %s16, 1
      %s447 = scalar_select %p446, %s16, 1
      %s448 = smul.addr %s447, 2
      %s449 = smul.addr %s448, 8
      %s450 = scalar_lea.vmem %s4, %s449
      // Predicated region
      $region25: #{fwd.1} parent=23 // pred_check
        %p451 = pneg %p60
      $region26: #{fwd.1} parent=23 // pred_check_branch
        %453 = sbr.rel (%p451) target = $region28
      $region27: #{fwd.1} parent=23 // pred_region
        _
      $region28: #{fwd.1} parent=23 // pred_fallthru
        _
      // Predicated region
      $region29: #{fwd.1} parent=23 // pred_check
        %p454 = pneg %p86
      $region30: #{fwd.1} parent=23 // pred_check_branch
        %456 = sbr.rel (%p454) target = $region32
      $region31: #{fwd.1} parent=23 // pred_region
        _
      $region32: #{fwd.1} parent=23 // pred_fallthru
        _
      // Predicated region
      $region33: #{fwd.1} parent=23 // pred_check
        %p457 = pneg %p112
      $region34: #{fwd.1} parent=23 // pred_check_branch
        %459 = sbr.rel (%p457) target = $region36
      $region35: #{fwd.1} parent=23 // pred_region
        _
      $region36: #{fwd.1} parent=23 // pred_fallthru
        _
      // Predicated region
      $region37: #{fwd.1} parent=23 // pred_check
        %p460 = pneg %p138
      $region38: #{fwd.1} parent=23 // pred_check_branch
        %462 = sbr.rel (%p460) target = $region40
      $region39: #{fwd.1} parent=23 // pred_region
        _
      $region40: #{fwd.1} parent=23 // pred_fallthru
        _
    $region24: #{fwd.1} parent=5 // pred_fallthru
      _
    %p463 = scmp.le.s32.totalorder 2, %s11
    // Predicated region
    $region41: #{fwd.1} parent=5 // pred_check
      %p464 = pneg %p463
    $region42: #{fwd.1} parent=5 // pred_check_branch
      %466 = sbr.rel (%p464) target = $region44
    $region43: #{fwd.1} parent=5 // pred_region
      %s467 = ssub.s32 %s11, 2
      // Predicated region
      $region45: #{fwd.1} parent=43 // pred_check
        %p468 = pneg %p66
      $region46: #{fwd.1} parent=43 // pred_check_branch
        %470 = sbr.rel (%p468) target = $region48
      $region47: #{fwd.1} parent=43 // pred_region
        %p471 = scmp.lt.s32.totalorder %s17, 1
        %s472 = scalar_select %p471, %s17, 1
        %s473 = smul.addr %s472, 2
        %s474 = smul.addr %s473, 8
        %s475 = scalar_lea.vmem %s1, %s474
      $region48: #{fwd.1} parent=43 // pred_fallthru
        _
      // Predicated region
      $region49: #{fwd.1} parent=43 // pred_check
        %p476 = pneg %p92
      $region50: #{fwd.1} parent=43 // pred_check_branch
        %478 = sbr.rel (%p476) target = $region52
      $region51: #{fwd.1} parent=43 // pred_region
        %p479 = scmp.lt.s32.totalorder %s17, 1
        %s480 = scalar_select %p479, %s17, 1
        %s481 = smul.addr %s480, 2
        %s482 = smul.addr %s481, 8
        %s483 = scalar_lea.vmem %s2, %s482
      $region52: #{fwd.1} parent=43 // pred_fallthru
        _
      // Predicated region
      $region53: #{fwd.1} parent=43 // pred_check
        %p484 = pneg %p118
      $region54: #{fwd.1} parent=43 // pred_check_branch
        %486 = sbr.rel (%p484) target = $region56
      $region55: #{fwd.1} parent=43 // pred_region
        %p487 = scmp.lt.s32.totalorder %s17, 1
        %s488 = scalar_select %p487, %s17, 1
        %s489 = smul.addr %s488, 2
        %s490 = smul.addr %s489, 8
        %s491 = scalar_lea.vmem %s3, %s490
      $region56: #{fwd.1} parent=43 // pred_fallthru
        _
      // Predicated region
      $region57: #{fwd.1} parent=43 // pred_check
        %p492 = pneg %p144
      $region58: #{fwd.1} parent=43 // pred_check_branch
        %494 = sbr.rel (%p492) target = $region60
      $region59: #{fwd.1} parent=43 // pred_region
        %p495 = scmp.lt.s32.totalorder %s17, 1
        %s496 = scalar_select %p495, %s17, 1
        %s497 = smul.addr %s496, 2
        %s498 = smul.addr %s497, 8
        %s499 = scalar_lea.vmem %s4, %s498
      $region60: #{fwd.1} parent=43 // pred_fallthru
        _
    $region44: #{fwd.1} parent=5 // pred_fallthru
      _
  $region6: #{fwd.1} parent=0 // loop_footer
    %s15 = sadd.s32 1, %s11
  $region7: #{fwd.1} parent=0 // loop_footer_branch
    %10 = sbr.rel target = $region3
  $region8: #{fwd.1} parent=0 // loop_exit
    _

</llo_original>
